<compile_context>
chip_gen: v6e
topology: v6e:2x2x1
jax: 0.10.0
libtpu: 0.0.40
codegen_flags: <defaults>
</compile_context>

<pallas_src>
import jax
import jax.numpy as jnp
from jax.experimental import pallas as pl
from jax.experimental.pallas import tpu as pltpu  # noqa: F401  (kept for TPU-specific tuning hooks)


def _attention_fused_kernel(s_ref, enc_ref, w_dec_ref, w_enc_ref, out_ref):
    """Fused: tanh -> collapsed fc1/fc2 score -> in-kernel repeat + flip -> softmax -> (B, seq)."""
    # s_ref:     (s_len,  B, dec_hid)   decoder state, native seq-major layout
    # enc_ref:   (seq_len, B, enc_hid)  encoder outputs, native layout (seq_len == 2 * s_len)
    # w_dec_ref: (1, 1, dec_hid)        collapsed weight, s half of the cat
    # w_enc_ref: (1, 1, enc_hid)        collapsed weight, enc half of the cat
    # out_ref:   (B, seq_len)           final attention weights

    # Per-(t, b) score contributions: VPU tanh/mul + XLU lane reduction over the hid dim.
    # score[t, b] = sum_d tanh(s)[t, b, d] * w_dec[d] + sum_e tanh(enc)[t, b, e] * w_enc[e]
    dec_half = jnp.sum(jnp.tanh(s_ref[...]) * w_dec_ref[...], axis=-1)     # (s_len, B)
    enc_sc = jnp.sum(jnp.tanh(enc_ref[...]) * w_enc_ref[...], axis=-1)     # (seq_len, B)

    # torch `s.repeat(2, 1, 1)`: duplicate the tiny half-score tile along seq in-kernel
    # (the dec-half tanh/mul/reduce work above is only done once).
    dec_full = jnp.concatenate([dec_half, dec_half], axis=0)               # (seq_len, B)
    scores = dec_full + enc_sc                                             # (seq_len, B)
    # NOTE: the collapsed bias (fc2_w @ fc1_b + fc2_b) is intentionally dropped — it adds
    # the same scalar to every score and the softmax below is invariant to it.

    # Flip (seq, B) -> (B, seq) in-kernel (single small vxpose) so the store writes the
    # module's final layout; then softmax over the batch axis (now sublanes), matching
    # F.softmax(a, dim=1).transpose(0, 1) of the reference module.
    scores_bt = jnp.transpose(scores)                                      # (B, seq_len)
    m = jnp.max(scores_bt, axis=0, keepdims=True)                          # (1, seq_len)
    e = jnp.exp(scores_bt - m)                                             # (B, seq_len)
    denom = jnp.sum(e, axis=0, keepdims=True)                              # (1, seq_len)
    out_ref[...] = e * pl.reciprocal(denom, approx=False)

    # TODO(synk): when the downstream context vector (weights @ enc_output) becomes part of
    # this module's forward, fuse it here while enc_output is still resident in VMEM.


def collapse_attention_params(params):
    """Collapse fc1 + fc2 once per parameter set (hoisted out of the per-step path).

    fc2(fc1(h)) = h @ (fc1_w.T @ fc2_w.T) + (fc1_b @ fc2_w.T + fc2_b); the nonlinearity is
    applied BEFORE fc1 in this module, so the collapse is exact.  The resulting scalar bias
    is softmax-invariant and therefore dropped.
    """
    fc1_w, fc1_b, fc2_w, fc2_b = params
    del fc1_b, fc2_b  # bias is softmax-invariant
    dec_hid = fc1_w.shape[0]
    w_eff = (fc2_w @ fc1_w).astype(jnp.float32)            # (1, dec_hid + enc_hid)
    w_dec = w_eff[:, :dec_hid].reshape(1, 1, dec_hid)      # pairs with the s half of the cat
    w_enc = w_eff[:, dec_hid:].reshape(1, 1, -1)           # pairs with the enc half of the cat
    return w_dec, w_enc


def attention_forward(s, enc_output, w_dec, w_enc):
    """s: (s_len, B, dec_hid), enc_output: (2*s_len, B, enc_hid) -> (B, 2*s_len)."""
    s_len, B, _ = s.shape
    seq_len, B2, _ = enc_output.shape
    assert B == B2 and seq_len == 2 * s_len, "module contract: seq_len == 2 * s_len"

    # Single-block kernel: no grid, no pipelining, whole (tiny) operands resident in VMEM.
    return pl.pallas_call(
        _attention_fused_kernel,
        out_shape=jax.ShapeDtypeStruct((B, seq_len), jnp.float32),
    )(s, enc_output, w_dec, w_enc)


def attention_reference(s, enc_output, params):
    """Pure-JAX reference mirroring the PyTorch forward exactly."""
    fc1_w, fc1_b, fc2_w, fc2_b = params
    s_rep = jnp.tile(s, (2, 1, 1))
    a = jnp.tanh(jnp.concatenate([s_rep, enc_output], axis=2))
    a = a @ fc1_w.T + fc1_b                 # fc1
    a = a @ fc2_w.T + fc2_b                 # fc2
    a = a[..., 0]                           # squeeze(2) -> (seq_len, B)
    return jax.nn.softmax(a, axis=1).T      # softmax(dim=1).transpose(0,1) -> (B, seq_len)


if __name__ == "__main__":
    enc_hid_dim = 32
    dec_hid_dim = 32
    s_len = 8
    seq_len = 2 * s_len      # module contract: enc seq_len == 2 * s_len (because of repeat(2,1,1))
    B = 8

    key = jax.random.PRNGKey(0)
    k_s, k_enc, k_w1, k_b1, k_w2, k_b2 = jax.random.split(key, 6)

    # deterministic synthetic parameters (PyTorch Linear shapes)
    fc1_w = 0.1 * jax.random.normal(k_w1, (dec_hid_dim, dec_hid_dim + enc_hid_dim),
                                    dtype=jnp.float32)
    fc1_b = 0.1 * jax.random.normal(k_b1, (dec_hid_dim,), dtype=jnp.float32)
    fc2_w = 0.1 * jax.random.normal(k_w2, (1, dec_hid_dim), dtype=jnp.float32)
    fc2_b = 0.1 * jax.random.normal(k_b2, (1,), dtype=jnp.float32)
    params = (fc1_w, fc1_b, fc2_w, fc2_b)

    # deterministic inputs, native (seq, batch, feat) layouts
    s = jax.random.normal(k_s, (s_len, B, dec_hid_dim), dtype=jnp.float32)
    enc_output = jax.random.normal(k_enc, (seq_len, B, enc_hid_dim), dtype=jnp.float32)

    # Hoisted once per parameter set (outside any decode-step loop).
    w_dec, w_enc = collapse_attention_params(params)

    out = attention_forward(s, enc_output, w_dec, w_enc)
    out = jax.block_until_ready(out)

    ref = attention_reference(s, enc_output, params)
    assert out.shape == (B, seq_len), out.shape
    assert jnp.allclose(out, ref, atol=1e-5, rtol=1e-5), "mismatch vs reference"

    print("KERNEL_OK")
</pallas_src>

<mosaic_0001>
module attributes {stable_mosaic.version = 11 : i64} {
  func.func @_attention_fused_kernel(%arg0: memref<8x8x32xf32, #tpu.memory_space<vmem>>, %arg1: memref<16x8x32xf32, #tpu.memory_space<vmem>>, %arg2: memref<1x1x32xf32, #tpu.memory_space<vmem>>, %arg3: memref<1x1x32xf32, #tpu.memory_space<vmem>>, %arg4: memref<8x16xf32, #tpu.memory_space<vmem>>) attributes {dimension_semantics = [], scalar_prefetch = 0 : i64, scratch_operands = 0 : i64, tpu.core_type = #tpu.core_type<tc>} {
    %c0 = arith.constant 0 : index
    %c0_0 = arith.constant 0 : index
    %c0_1 = arith.constant 0 : index
    %0 = vector.load %arg0[%c0, %c0_0, %c0_1] : memref<8x8x32xf32, #tpu.memory_space<vmem>>, vector<8x8x32xf32>
    %1 = math.tanh %0 : vector<8x8x32xf32>
    %c0_2 = arith.constant 0 : index
    %c0_3 = arith.constant 0 : index
    %c0_4 = arith.constant 0 : index
    %2 = vector.load %arg2[%c0_2, %c0_3, %c0_4] : memref<1x1x32xf32, #tpu.memory_space<vmem>>, vector<1x1x32xf32>
    %3 = vector.broadcast %2 : vector<1x1x32xf32> to vector<8x8x32xf32>
    %4 = arith.mulf %1, %3 : vector<8x8x32xf32>
    %cst = arith.constant dense<0.000000e+00> : vector<8x8xf32>
    %5 = vector.multi_reduction <add>, %4, %cst [2] : vector<8x8x32xf32> to vector<8x8xf32>
    %c0_5 = arith.constant 0 : index
    %c0_6 = arith.constant 0 : index
    %c0_7 = arith.constant 0 : index
    %6 = vector.load %arg1[%c0_5, %c0_6, %c0_7] : memref<16x8x32xf32, #tpu.memory_space<vmem>>, vector<16x8x32xf32>
    %7 = math.tanh %6 : vector<16x8x32xf32>
    %c0_8 = arith.constant 0 : index
    %c0_9 = arith.constant 0 : index
    %c0_10 = arith.constant 0 : index
    %8 = vector.load %arg3[%c0_8, %c0_9, %c0_10] : memref<1x1x32xf32, #tpu.memory_space<vmem>>, vector<1x1x32xf32>
    %9 = vector.broadcast %8 : vector<1x1x32xf32> to vector<16x8x32xf32>
    %10 = arith.mulf %7, %9 : vector<16x8x32xf32>
    %cst_11 = arith.constant dense<0.000000e+00> : vector<16x8xf32>
    %11 = vector.multi_reduction <add>, %10, %cst_11 [2] : vector<16x8x32xf32> to vector<16x8xf32>
    %12 = tpu.concatenate %5, %5 in 0 : vector<8x8xf32>, vector<8x8xf32> -> vector<16x8xf32>
    %13 = arith.addf %12, %11 : vector<16x8xf32>
    %14 = tpu.transpose %13, [1, 0] : vector<16x8xf32> -> vector<8x16xf32>
    %cst_12 = arith.constant dense<0xFF800000> : vector<16xf32>
    %15 = vector.multi_reduction <maximumf>, %14, %cst_12 [0] : vector<8x16xf32> to vector<16xf32>
    %16 = vector.shape_cast %15 : vector<16xf32> to vector<1x16xf32>
    %17 = vector.broadcast %16 : vector<1x16xf32> to vector<8x16xf32>
    %18 = arith.subf %14, %17 : vector<8x16xf32>
    %19 = math.exp %18 : vector<8x16xf32>
    %cst_13 = arith.constant dense<0.000000e+00> : vector<16xf32>
    %20 = vector.multi_reduction <add>, %19, %cst_13 [0] : vector<8x16xf32> to vector<16xf32>
    %21 = vector.shape_cast %20 : vector<16xf32> to vector<1x16xf32>
    %22 = tpu.reciprocal %21 : vector<1x16xf32> -> vector<1x16xf32>
    %23 = vector.broadcast %22 : vector<1x16xf32> to vector<8x16xf32>
    %24 = arith.mulf %19, %23 : vector<8x16xf32>
    %c0_14 = arith.constant 0 : index
    %c0_15 = arith.constant 0 : index
    %25 = vector.load %arg4[%c0_14, %c0_15] : memref<8x16xf32, #tpu.memory_space<vmem>>, vector<8x16xf32>
    tpu.vector_store %arg4[%c0_14, %c0_15], %24 {strides = array<i32>} : memref<8x16xf32, #tpu.memory_space<vmem>>, vector<8x16xf32>,
    return
  }
}

</mosaic_0001>

<llo_original>
// kernel: tpu_custom_call.1
$region0: #{tpu_custom_call.1}
  #allocation0 [shape = 'u32[]', space=smem, size = 0x4, offset = 0x4, fixed_abs, tag = 'smem constant byte address 0x4 - core index']
  #allocation1 [shape = 'u32[144,128]{1,0:T(1,128)}', space=vmem, size = 0x12000, scoped, tag = 'internal scratch']
  %s0 = inlined_call_operand.hbm [shape: f32[8,8,32], index: 0, kind: input, shape index: {}]
  %s1 = inlined_call_operand.hbm [shape: f32[16,8,32], index: 1, kind: input, shape index: {}]
  %s2 = inlined_call_operand.vmem [shape: f32[1,1,32], index: 2, kind: input, shape index: {}]
  %s3 = inlined_call_operand.vmem [shape: f32[1,1,32], index: 3, kind: input, shape index: {}]
  %s4 = inlined_call_operand.hbm [shape: f32[8,16], index: 4, kind: output, shape index: {}]
  %s5 = sld [smem:[#allocation0]]
  $region34: #{tpu_custom_call.1} parent=0
    _
  %s7 = ssub.s32 1, %s5
  %s8 = scalar_select 0, %s7, %s5
  $region1: #{tpu_custom_call.1} parent=0
    #allocation2 [shape = 'u8[32768]{0}', space=vmem, size = 0x8000, scoped, tag = 'input window, operand 0, single buffered']
    #allocation3 [shape = 's32[1]{0}', space=sflag, size = 0x4, scoped, tag = 'scoped memory for tpu_custom_call.1']
    #allocation4 [shape = 's32[1]{0}', space=sflag, size = 0x4, scoped, tag = 'scoped memory for tpu_custom_call.1']
    #allocation5 [shape = 'u8[65536]{0}', space=vmem, size = 0x10000, scoped, tag = 'input window, operand 1, single buffered']
    #allocation6 [shape = 's32[1]{0}', space=sflag, size = 0x4, scoped, tag = 'scoped memory for tpu_custom_call.1']
    #allocation7 [shape = 'u8[4096]{0}', space=vmem, size = 0x1000, scoped, tag = 'output window, operand 0, single buffered']
    %9 = vsyncpa [#allocation3], 0
    %10 = vsyncpa [#allocation6], 0
    %11 = vsyncpa [#allocation4], 0
    // Predicated region
    $region2: #{tpu_custom_call.1} parent=1 // pred_check
      _
    $region3: #{tpu_custom_call.1} parent=1 // pred_check_branch
      %13 = sbr.rel (0) target = $region5
    $region4: #{tpu_custom_call.1} parent=1 // pred_region
      %s15 = ssub.s32 1024, 1024
      %16 = vsyncadd [#allocation3], %s15
      %s17 = sshll.u32 [#allocation2], 4
      %s18 = int_to_ptr.vmem [resolvable:$true] %s17
      %23 = dma.hbm_to_vmem [thread:$0]  %s0, 1024, %s18, [#allocation3], 128, 128, 8
    $region5: #{tpu_custom_call.1} parent=1 // pred_fallthru
      _
    // Predicated region
    $region6: #{tpu_custom_call.1} parent=1 // pred_check
      _
    $region7: #{tpu_custom_call.1} parent=1 // pred_check_branch
      %25 = sbr.rel (0) target = $region9
    $region8: #{tpu_custom_call.1} parent=1 // pred_region
      %s27 = ssub.s32 2048, 2048
      %28 = vsyncadd [#allocation6], %s27
      %s29 = sshll.u32 [#allocation5], 4
      %s30 = int_to_ptr.vmem [resolvable:$true] %s29
      %35 = dma.hbm_to_vmem [thread:$0]  %s1, 2048, %s30, [#allocation6], 128, 128, 8
    $region9: #{tpu_custom_call.1} parent=1 // pred_fallthru
      _
    // Predicated region
    $region10: #{tpu_custom_call.1} parent=1 // pred_check
      _
    $region11: #{tpu_custom_call.1} parent=1 // pred_check_branch
      %37 = sbr.rel (0) target = $region13
    $region12: #{tpu_custom_call.1} parent=1 // pred_region
      _
    $region13: #{tpu_custom_call.1} parent=1 // pred_fallthru
      _
    // Predicated region
    $region14: #{tpu_custom_call.1} parent=1 // pred_check
      _
    $region15: #{tpu_custom_call.1} parent=1 // pred_check_branch
      %39 = sbr.rel (0) target = $region17
    $region16: #{tpu_custom_call.1} parent=1 // pred_region
      _
    $region17: #{tpu_custom_call.1} parent=1 // pred_fallthru
      _
    // Predicated region
    $region18: #{tpu_custom_call.1} parent=1 // pred_check
      _
    $region19: #{tpu_custom_call.1} parent=1 // pred_check_branch
      %41 = sbr.rel (0) target = $region21
    $region20: #{tpu_custom_call.1} parent=1 // pred_region
      %42 = dma.done [#allocation3], 1024
    $region21: #{tpu_custom_call.1} parent=1 // pred_fallthru
      _
    // Predicated region
    $region22: #{tpu_custom_call.1} parent=1 // pred_check
      _
    $region23: #{tpu_custom_call.1} parent=1 // pred_check_branch
      %44 = sbr.rel (0) target = $region25
    $region24: #{tpu_custom_call.1} parent=1 // pred_region
      %45 = dma.done [#allocation6], 2048
    $region25: #{tpu_custom_call.1} parent=1 // pred_fallthru
      _
    %v46 = vld [vmem:[#allocation2] sm:$0xff]
    %v47 = vld [vmem:[#allocation2 + $0x8] sm:$0xff]
    %v48 = vld [vmem:[#allocation2 + $0x10] sm:$0xff]
    %v49 = vld [vmem:[#allocation2 + $0x18] sm:$0xff]
    %v50 = vld [vmem:[#allocation2 + $0x20] sm:$0xff]
    %v51 = vld [vmem:[#allocation2 + $0x28] sm:$0xff]
    %v52 = vld [vmem:[#allocation2 + $0x30] sm:$0xff]
    %v53 = vld [vmem:[#allocation2 + $0x38] sm:$0xff]
    %v54 = vtanh.pop %v46
    %v55 = vtanh.pop %v47
    %v56 = vtanh.pop %v48
    %v57 = vtanh.pop %v49
    %v58 = vtanh.pop %v50
    %v59 = vtanh.pop %v51
    %v60 = vtanh.pop %v52
    %v61 = vtanh.pop %v53
    %v62 = vld [vmem:[%s2] sm:$0x1]
    %v64 = vlaneseq
    %v65 = vshrl.u32 %v64, 7
    %v66 = vsub.s32 0, %v65
    %v67 = vrot.slane %v62, %v66
    %v69 = vmul.f32 %v54, %v67
    %v70 = vmul.f32 %v55, %v67
    %v71 = vmul.f32 %v56, %v67
    %v72 = vmul.f32 %v57, %v67
    %v73 = vmul.f32 %v58, %v67
    %v74 = vmul.f32 %v59, %v67
    %v75 = vmul.f32 %v60, %v67
    %v76 = vmul.f32 %v61, %v67
    %vm77 = vcmask 261120
    %v78 = vsel %vm77, %v69, 0.0
    %79 = vadd.xlane.f32.xlu0 %v78
    %v80 = vpop.xlane.xlu0 %79
    %v81 = vsel %vm77, %v70, 0.0
    %82 = vadd.xlane.f32.xlu0 %v81
    %v83 = vpop.xlane.xlu0 %82
    %v84 = vsel %vm77, %v71, 0.0
    %85 = vadd.xlane.f32.xlu0 %v84
    %v86 = vpop.xlane.xlu0 %85
    %v87 = vsel %vm77, %v72, 0.0
    %88 = vadd.xlane.f32.xlu0 %v87
    %v89 = vpop.xlane.xlu0 %88
    %v90 = vsel %vm77, %v73, 0.0
    %91 = vadd.xlane.f32.xlu0 %v90
    %v92 = vpop.xlane.xlu0 %91
    %v93 = vsel %vm77, %v74, 0.0
    %94 = vadd.xlane.f32.xlu0 %v93
    %v95 = vpop.xlane.xlu0 %94
    %v96 = vsel %vm77, %v75, 0.0
    %97 = vadd.xlane.f32.xlu0 %v96
    %v98 = vpop.xlane.xlu0 %97
    %v99 = vsel %vm77, %v76, 0.0
    %100 = vadd.xlane.f32.xlu0 %v99
    %v101 = vpop.xlane.xlu0 %100
    %v102 = vld [vmem:[#allocation5] sm:$0xff]
    %v103 = vld [vmem:[#allocation5 + $0x8] sm:$0xff]
    %v104 = vld [vmem:[#allocation5 + $0x10] sm:$0xff]
    %v105 = vld [vmem:[#allocation5 + $0x18] sm:$0xff]
    %v106 = vld [vmem:[#allocation5 + $0x20] sm:$0xff]
    %v107 = vld [vmem:[#allocation5 + $0x28] sm:$0xff]
    %v108 = vld [vmem:[#allocation5 + $0x30] sm:$0xff]
    %v109 = vld [vmem:[#allocation5 + $0x38] sm:$0xff]
    %v110 = vld [vmem:[#allocation5 + $0x40] sm:$0xff]
    %v111 = vld [vmem:[#allocation5 + $0x48] sm:$0xff]
    %v112 = vld [vmem:[#allocation5 + $0x50] sm:$0xff]
    %v113 = vld [vmem:[#allocation5 + $0x58] sm:$0xff]
    %v114 = vld [vmem:[#allocation5 + $0x60] sm:$0xff]
    %v115 = vld [vmem:[#allocation5 + $0x68] sm:$0xff]
    %v116 = vld [vmem:[#allocation5 + $0x70] sm:$0xff]
    %v117 = vld [vmem:[#allocation5 + $0x78] sm:$0xff]
    %v118 = vtanh.pop %v102
    %v119 = vtanh.pop %v103
    %v120 = vtanh.pop %v104
    %v121 = vtanh.pop %v105
    %v122 = vtanh.pop %v106
    %v123 = vtanh.pop %v107
    %v124 = vtanh.pop %v108
    %v125 = vtanh.pop %v109
    %v126 = vtanh.pop %v110
    %v127 = vtanh.pop %v111
    %v128 = vtanh.pop %v112
    %v129 = vtanh.pop %v113
    %v130 = vtanh.pop %v114
    %v131 = vtanh.pop %v115
    %v132 = vtanh.pop %v116
    %v133 = vtanh.pop %v117
    %v134 = vld [vmem:[%s3] sm:$0x1]
    %v136 = vlaneseq
    %v137 = vshrl.u32 %v136, 7
    %v138 = vsub.s32 0, %v137
    %v139 = vrot.slane %v134, %v138
    %v141 = vmul.f32 %v118, %v139
    %v142 = vmul.f32 %v119, %v139
    %v143 = vmul.f32 %v120, %v139
    %v144 = vmul.f32 %v121, %v139
    %v145 = vmul.f32 %v122, %v139
    %v146 = vmul.f32 %v123, %v139
    %v147 = vmul.f32 %v124, %v139
    %v148 = vmul.f32 %v125, %v139
    %v149 = vmul.f32 %v126, %v139
    %v150 = vmul.f32 %v127, %v139
    %v151 = vmul.f32 %v128, %v139
    %v152 = vmul.f32 %v129, %v139
    %v153 = vmul.f32 %v130, %v139
    %v154 = vmul.f32 %v131, %v139
    %v155 = vmul.f32 %v132, %v139
    %v156 = vmul.f32 %v133, %v139
    %v157 = vsel %vm77, %v141, 0.0
    %158 = vadd.xlane.f32.xlu0 %v157
    %v159 = vpop.xlane.xlu0 %158
    %v160 = vsel %vm77, %v142, 0.0
    %161 = vadd.xlane.f32.xlu0 %v160
    %v162 = vpop.xlane.xlu0 %161
    %v163 = vsel %vm77, %v143, 0.0
    %164 = vadd.xlane.f32.xlu0 %v163
    %v165 = vpop.xlane.xlu0 %164
    %v166 = vsel %vm77, %v144, 0.0
    %167 = vadd.xlane.f32.xlu0 %v166
    %v168 = vpop.xlane.xlu0 %167
    %v169 = vsel %vm77, %v145, 0.0
    %170 = vadd.xlane.f32.xlu0 %v169
    %v171 = vpop.xlane.xlu0 %170
    %v172 = vsel %vm77, %v146, 0.0
    %173 = vadd.xlane.f32.xlu0 %v172
    %v174 = vpop.xlane.xlu0 %173
    %v175 = vsel %vm77, %v147, 0.0
    %176 = vadd.xlane.f32.xlu0 %v175
    %v177 = vpop.xlane.xlu0 %176
    %v178 = vsel %vm77, %v148, 0.0
    %179 = vadd.xlane.f32.xlu0 %v178
    %v180 = vpop.xlane.xlu0 %179
    %v181 = vsel %vm77, %v149, 0.0
    %182 = vadd.xlane.f32.xlu0 %v181
    %v183 = vpop.xlane.xlu0 %182
    %v184 = vsel %vm77, %v150, 0.0
    %185 = vadd.xlane.f32.xlu0 %v184
    %v186 = vpop.xlane.xlu0 %185
    %v187 = vsel %vm77, %v151, 0.0
    %188 = vadd.xlane.f32.xlu0 %v187
    %v189 = vpop.xlane.xlu0 %188
    %v190 = vsel %vm77, %v152, 0.0
    %191 = vadd.xlane.f32.xlu0 %v190
    %v192 = vpop.xlane.xlu0 %191
    %v193 = vsel %vm77, %v153, 0.0
    %194 = vadd.xlane.f32.xlu0 %v193
    %v195 = vpop.xlane.xlu0 %194
    %v196 = vsel %vm77, %v154, 0.0
    %197 = vadd.xlane.f32.xlu0 %v196
    %v198 = vpop.xlane.xlu0 %197
    %v199 = vsel %vm77, %v155, 0.0
    %200 = vadd.xlane.f32.xlu0 %v199
    %v201 = vpop.xlane.xlu0 %200
    %v202 = vsel %vm77, %v156, 0.0
    %203 = vadd.xlane.f32.xlu0 %v202
    %v204 = vpop.xlane.xlu0 %203
    %v213 = vlaneseq
    %v214 = vand.u32 %v213, 127
    %v215 = vlaneseq
    %v216 = vshrl.u32 %v215, 7
    %v217 = vsub.s32 %v214, %v216
    %v218 = vrot.slane %v80, %v217
    %v219 = vlaneseq
    %v220 = vshrl.u32 %v219, 7
    %v221 = vsub.s32 %v214, %v220
    %v222 = vrot.slane %v83, %v221
    %v223 = vlaneseq
    %v224 = vshrl.u32 %v223, 7
    %v225 = vsub.s32 %v214, %v224
    %v226 = vrot.slane %v86, %v225
    %v227 = vlaneseq
    %v228 = vshrl.u32 %v227, 7
    %v229 = vsub.s32 %v214, %v228
    %v230 = vrot.slane %v89, %v229
    %v231 = vlaneseq
    %v232 = vshrl.u32 %v231, 7
    %v233 = vsub.s32 %v214, %v232
    %v234 = vrot.slane %v92, %v233
    %v235 = vlaneseq
    %v236 = vshrl.u32 %v235, 7
    %v237 = vsub.s32 %v214, %v236
    %v238 = vrot.slane %v95, %v237
    %v239 = vlaneseq
    %v240 = vshrl.u32 %v239, 7
    %v241 = vsub.s32 %v214, %v240
    %v242 = vrot.slane %v98, %v241
    %v243 = vlaneseq
    %v244 = vshrl.u32 %v243, 7
    %v245 = vsub.s32 %v214, %v244
    %v246 = vrot.slane %v101, %v245
    %vm247 = vcmask 1041409
    %v248 = vsel %vm247, %v222, %v218
    %vm249 = vcmask 1042434
    %v250 = vsel %vm249, %v226, %v248
    %vm251 = vcmask 1043459
    %v252 = vsel %vm251, %v230, %v250
    %vm253 = vcmask 1044484
    %v254 = vsel %vm253, %v234, %v252
    %vm255 = vcmask 1045509
    %v256 = vsel %vm255, %v238, %v254
    %vm257 = vcmask 1046534
    %v258 = vsel %vm257, %v242, %v256
    %vm259 = vcmask 1047559
    %v260 = vsel %vm259, %v246, %v258
    %v278 = vlaneseq
    %v279 = vshrl.u32 %v278, 7
    %v280 = vsub.s32 %v214, %v279
    %v281 = vrot.slane %v159, %v280
    %v282 = vlaneseq
    %v283 = vshrl.u32 %v282, 7
    %v284 = vsub.s32 %v214, %v283
    %v285 = vrot.slane %v162, %v284
    %v286 = vlaneseq
    %v287 = vshrl.u32 %v286, 7
    %v288 = vsub.s32 %v214, %v287
    %v289 = vrot.slane %v165, %v288
    %v290 = vlaneseq
    %v291 = vshrl.u32 %v290, 7
    %v292 = vsub.s32 %v214, %v291
    %v293 = vrot.slane %v168, %v292
    %v294 = vlaneseq
    %v295 = vshrl.u32 %v294, 7
    %v296 = vsub.s32 %v214, %v295
    %v297 = vrot.slane %v171, %v296
    %v298 = vlaneseq
    %v299 = vshrl.u32 %v298, 7
    %v300 = vsub.s32 %v214, %v299
    %v301 = vrot.slane %v174, %v300
    %v302 = vlaneseq
    %v303 = vshrl.u32 %v302, 7
    %v304 = vsub.s32 %v214, %v303
    %v305 = vrot.slane %v177, %v304
    %v306 = vlaneseq
    %v307 = vshrl.u32 %v306, 7
    %v308 = vsub.s32 %v214, %v307
    %v309 = vrot.slane %v180, %v308
    %v310 = vlaneseq
    %v311 = vshrl.u32 %v310, 7
    %v312 = vsub.s32 %v214, %v311
    %v313 = vrot.slane %v183, %v312
    %v314 = vlaneseq
    %v315 = vshrl.u32 %v314, 7
    %v316 = vsub.s32 %v214, %v315
    %v317 = vrot.slane %v186, %v316
    %v318 = vlaneseq
    %v319 = vshrl.u32 %v318, 7
    %v320 = vsub.s32 %v214, %v319
    %v321 = vrot.slane %v189, %v320
    %v322 = vlaneseq
    %v323 = vshrl.u32 %v322, 7
    %v324 = vsub.s32 %v214, %v323
    %v325 = vrot.slane %v192, %v324
    %v326 = vlaneseq
    %v327 = vshrl.u32 %v326, 7
    %v328 = vsub.s32 %v214, %v327
    %v329 = vrot.slane %v195, %v328
    %v330 = vlaneseq
    %v331 = vshrl.u32 %v330, 7
    %v332 = vsub.s32 %v214, %v331
    %v333 = vrot.slane %v198, %v332
    %v334 = vlaneseq
    %v335 = vshrl.u32 %v334, 7
    %v336 = vsub.s32 %v214, %v335
    %v337 = vrot.slane %v201, %v336
    %v338 = vlaneseq
    %v339 = vshrl.u32 %v338, 7
    %v340 = vsub.s32 %v214, %v339
    %v341 = vrot.slane %v204, %v340
    %v342 = vsel %vm247, %v285, %v281
    %v343 = vsel %vm249, %v289, %v342
    %v344 = vsel %vm251, %v293, %v343
    %v345 = vsel %vm253, %v297, %v344
    %v346 = vsel %vm255, %v301, %v345
    %v347 = vsel %vm257, %v305, %v346
    %v348 = vsel %vm259, %v309, %v347
    %v349 = vsel %vm247, %v317, %v313
    %v350 = vsel %vm249, %v321, %v349
    %v351 = vsel %vm251, %v325, %v350
    %v352 = vsel %vm253, %v329, %v351
    %v353 = vsel %vm255, %v333, %v352
    %v354 = vsel %vm257, %v337, %v353
    %v355 = vsel %vm259, %v341, %v354
    %v358 = vadd.f32 %v260, %v348
    %v359 = vadd.f32 %v260, %v355
    %360 = vxpose.xlu0.b32.start [1/16] %v358, 128
    %361 = vxpose.xlu0.b32.cont [2/16] %v359, 128
    %362 = vxpose.xlu0.b32.cont [3/16] 0.0, 128
    %363 = vxpose.xlu0.b32.cont [4/16] 0.0, 128
    %364 = vxpose.xlu0.b32.cont [5/16] 0.0, 128
    %365 = vxpose.xlu0.b32.cont [6/16] 0.0, 128
    %366 = vxpose.xlu0.b32.cont [7/16] 0.0, 128
    %367 = vxpose.xlu0.b32.cont [8/16] 0.0, 128
    %368 = vxpose.xlu0.b32.cont [9/16] 0.0, 128
    %369 = vxpose.xlu0.b32.cont [10/16] 0.0, 128
    %370 = vxpose.xlu0.b32.cont [11/16] 0.0, 128
    %371 = vxpose.xlu0.b32.cont [12/16] 0.0, 128
    %372 = vxpose.xlu0.b32.cont [13/16] 0.0, 128
    %373 = vxpose.xlu0.b32.cont [14/16] 0.0, 128
    %374 = vxpose.xlu0.b32.cont [15/16] 0.0, 128
    %375 = vxpose.xlu0.b32.end [16/16] 0.0, 128
    %v376 = vpop.trf.xlu0
    %v377 = vpop.trf.xlu0
    %v378 = vpop.trf.xlu0
    %v379 = vpop.trf.xlu0
    %v380 = vpop.trf.xlu0
    %v381 = vpop.trf.xlu0
    %v382 = vpop.trf.xlu0
    %v383 = vpop.trf.xlu0
    %v384 = vpop.trf.xlu0
    %v385 = vpop.trf.xlu0
    %v386 = vpop.trf.xlu0
    %v387 = vpop.trf.xlu0
    %v388 = vpop.trf.xlu0
    %v389 = vpop.trf.xlu0
    %v390 = vpop.trf.xlu0
    %v391 = vpop.trf.xlu0
    %vm392 = vcmask 130048
    %v393 = vsel %vm392, %v376, -inf
    %v394 = vrot.slane %v393, 4
    %v395 = vmax.f32 %v393, %v394
    %v396 = vrot.slane %v395, 2
    %v397 = vmax.f32 %v395, %v396
    %v398 = vrot.slane %v397, 1
    %v399 = vmax.f32 %v397, %v398
    %v400 = vsub.f32 %v376, %v399
    %v401 = vmul.f32 %v400, 1.442695
    %v402 = vpow.pop %v401
    %v403 = vsel %vm392, %v402, 0.0
    %v404 = vrot.slane %v403, 4
    %v405 = vadd.f32 %v403, %v404
    %v406 = vrot.slane %v405, 2
    %v407 = vadd.f32 %v405, %v406
    %v408 = vrot.slane %v407, 1
    %v409 = vadd.f32 %v407, %v408
    %v410 = vrcp.pop %v409
    %v411 = vmul.f32 %v402, %v410
    %412 = vst.msk [vmem:[#allocation7] sm:$0xff] %vm392, %v411
    // Predicated region
    $region26: #{tpu_custom_call.1} parent=1 // pred_check
      _
    $region27: #{tpu_custom_call.1} parent=1 // pred_check_branch
      %414 = sbr.rel (0) target = $region29
    $region28: #{tpu_custom_call.1} parent=1 // pred_region
      %s416 = ssub.s32 128, 128
      %417 = vsyncadd [#allocation4], %s416
      %s419 = sshll.u32 [#allocation7], 4
      %s420 = int_to_ptr.vmem [resolvable:$true] %s419
      %422 = dma.vmem_to_hbm [thread:$0]  %s420, 128, %s4, [#allocation4]
    $region29: #{tpu_custom_call.1} parent=1 // pred_fallthru
      _
    // Predicated region
    $region30: #{tpu_custom_call.1} parent=1 // pred_check
      _
    $region31: #{tpu_custom_call.1} parent=1 // pred_check_branch
      %424 = sbr.rel (0) target = $region33
    $region32: #{tpu_custom_call.1} parent=1 // pred_region
      %425 = dma.done [#allocation4], 128
    $region33: #{tpu_custom_call.1} parent=1 // pred_fallthru
      _
    %426 = vsyncpa [#allocation3], 1
    %427 = vsyncpa [#allocation6], 1
    %428 = vsyncpa [#allocation4], 1

</llo_original>
